<compile_context>
chip_gen: v5e
topology: v5e:2x2
jax: 0.10.0
libtpu: 0.0.40
codegen_flags: <defaults>
</compile_context>

<pallas_src>
import jax
import jax.numpy as jnp
from jax.experimental import pallas as pl
from jax.experimental.pallas import tpu as pltpu


def _round_up(x, m):
    return ((x + m - 1) // m) * m


def _actor_kernel(obs_ref, w1_ref, b1_ref, w2_ref, b2_ref, wmu_ref, bmu_ref,
                  mu_ref):
    """One batch tile: trunk (2x Linear+tanh) + mean head."""
    # Cast to the matmul (MXU) dtype in-VMEM; HBM read stays in obs' dtype.
    x = obs_ref[...].astype(w1_ref.dtype)
    # trunk layer 1: Linear + tanh  (f32 MXU accumulation, f32 bias/tanh)
    h1 = jnp.tanh(
        jnp.dot(x, w1_ref[...], preferred_element_type=jnp.float32)
        + b1_ref[...])
    # trunk layer 2: Linear + tanh
    h2 = jnp.tanh(
        jnp.dot(h1.astype(w2_ref.dtype), w2_ref[...],
                preferred_element_type=jnp.float32)
        + b2_ref[...])
    # mean head
    mu = (jnp.dot(h2.astype(wmu_ref.dtype), wmu_ref[...],
                  preferred_element_type=jnp.float32)
          + bmu_ref[...])
    mu_ref[...] = mu.astype(mu_ref.dtype)


def actor_forward(obs, params, *, block_b=1024, compute_dtype=jnp.float32):
    """Fused actor MLP.  obs: [B, feature_dim].  Returns (mean[B,A], std[B,A])."""
    w1, b1, w2, b2, wmu, bmu, log_std = params
    B, F = obs.shape
    A = wmu.shape[1]

    # Batch tile: multiple of 8 (sublane), capped at block_b and at ceil8(B).
    tb = min(_round_up(block_b, 8), _round_up(B, 8))
    b_pad = _round_up(B, tb)
    if b_pad != B:
        # Only pay the pad copy when the tile doesn't divide B.
        obs = jnp.pad(obs, ((0, b_pad - B), (0, 0)))

    # Matmul operands in compute dtype; biases stay f32 (added to f32 MXU out).
    w1c = w1.astype(compute_dtype)
    w2c = w2.astype(compute_dtype)
    wmuc = wmu.astype(compute_dtype)
    b1f = b1.astype(jnp.float32)
    b2f = b2.astype(jnp.float32)
    bmuf = bmu.astype(jnp.float32)

    grid = (b_pad // tb,)

    # Weights/biases: full-array block, constant index_map -> resident in VMEM
    # across all grid steps (loaded from HBM once).
    def resident(a):
        return pl.BlockSpec(a.shape, lambda i, _nd=a.ndim: (0,) * _nd)

    # VMEM budget (per step, double-buffered): 2*tb*(F+A)*4 bytes of streamed
    # tiles + resident weights; with tb<=4096 and F,H<=1024 this stays well
    # under the default scoped-VMEM limit on v5e/v6e/v7x.
    mu = pl.pallas_call(
        _actor_kernel,
        out_shape=jax.ShapeDtypeStruct((b_pad, A), jnp.float32),
        grid=grid,
        in_specs=[
            pl.BlockSpec((tb, F), lambda i: (i, 0)),  # obs tile (pipelined)
            resident(w1c), resident(b1f),
            resident(w2c), resident(b2f),
            resident(wmuc), resident(bmuf),
        ],
        out_specs=pl.BlockSpec((tb, A), lambda i: (i, 0)),
        compiler_params=pltpu.CompilerParams(
            dimension_semantics=("parallel",)),
    )(obs, w1c, b1f, w2c, b2f, wmuc, bmuf)

    mu = mu[:B]
    # state-independent std: computed once on the host side, broadcast view.
    std = jnp.broadcast_to(jnp.exp(log_std.astype(jnp.float32)), (B, A))
    return mu, std


def init_params(key, feature_dim, hidden_dim, action_dim):
    """Deterministic init matching nn.Linear's U(-1/sqrt(fan_in), 1/sqrt(fan_in))."""
    ks = jax.random.split(key, 6)

    def lin(kw, kb, fan_in, fan_out):
        bound = 1.0 / jnp.sqrt(fan_in)
        w = jax.random.uniform(kw, (fan_in, fan_out), jnp.float32, -bound, bound)
        b = jax.random.uniform(kb, (1, fan_out), jnp.float32, -bound, bound)
        return w, b

    w1, b1 = lin(ks[0], ks[1], feature_dim, hidden_dim)
    w2, b2 = lin(ks[2], ks[3], hidden_dim, hidden_dim)
    wmu, bmu = lin(ks[4], ks[5], hidden_dim, action_dim)
    log_std = jnp.zeros((1, action_dim), jnp.float32)   # nn.Parameter(zeros)
    return (w1, b1, w2, b2, wmu, bmu, log_std)


def reference_forward(obs, params):
    w1, b1, w2, b2, wmu, bmu, log_std = params
    h1 = jnp.tanh(obs @ w1 + b1)
    h2 = jnp.tanh(h1 @ w2 + b2)
    mu = h2 @ wmu + bmu
    std = jnp.broadcast_to(jnp.exp(log_std), mu.shape)
    return mu, std


if __name__ == "__main__":
    feature_dim, hidden_dim, action_dim = 32, 32, 8
    batch = 1000                      # ragged vs. the 256-row batch tile

    key = jax.random.PRNGKey(0)
    k_obs, k_par = jax.random.split(key)

    obs = jax.random.normal(k_obs, (batch, feature_dim), jnp.float32)
    params = init_params(k_par, feature_dim, hidden_dim, action_dim)

    mu_ref, std_ref = reference_forward(obs, params)

    # f32 path (exact): multi-step batch grid + resident weights.
    mu, std = actor_forward(obs, params, block_b=256,
                            compute_dtype=jnp.float32)
    jax.block_until_ready((mu, std))
    assert mu.shape == (batch, action_dim) and std.shape == (batch, action_dim)
    assert jnp.allclose(mu, mu_ref, atol=1e-5, rtol=1e-5)
    assert jnp.allclose(std, std_ref, atol=1e-6, rtol=1e-6)

    # bf16 matmul path (2x MXU rate; obs cast happens in-kernel, f32 HBM read,
    # f32 accumulation/tanh).
    mu_bf, std_bf = actor_forward(obs, params, block_b=256,
                                  compute_dtype=jnp.bfloat16)
    jax.block_until_ready((mu_bf, std_bf))
    assert mu_bf.shape == (batch, action_dim)
    assert jnp.allclose(mu_bf, mu_ref, atol=5e-2, rtol=5e-2)
    assert jnp.allclose(std_bf, std_ref, atol=1e-6, rtol=1e-6)

    print("KERNEL_OK")
</pallas_src>

<mosaic_0001>
module attributes {stable_mosaic.version = 11 : i64} {
  func.func @_actor_kernel(%arg0: i32, %arg1: memref<256x32xf32, #tpu.memory_space<vmem>>, %arg2: memref<32x32xf32, #tpu.memory_space<vmem>>, %arg3: memref<1x32xf32, #tpu.memory_space<vmem>>, %arg4: memref<32x32xf32, #tpu.memory_space<vmem>>, %arg5: memref<1x32xf32, #tpu.memory_space<vmem>>, %arg6: memref<32x8xf32, #tpu.memory_space<vmem>>, %arg7: memref<1x8xf32, #tpu.memory_space<vmem>>, %arg8: memref<256x8xf32, #tpu.memory_space<vmem>>) attributes {dimension_semantics = [#tpu.dimension_semantics<parallel>], iteration_bounds = array<i64: 4>, scalar_prefetch = 0 : i64, scratch_operands = 0 : i64, tpu.core_type = #tpu.core_type<tc>, window_params = [{transform_indices = @transform_0, window_bounds = array<i64: 256, 32>}, {pipeline_mode = #tpu.pipeline_mode<synchronous>, transform_indices = @transform_1, window_bounds = array<i64: 32, 32>}, {pipeline_mode = #tpu.pipeline_mode<synchronous>, transform_indices = @transform_2, window_bounds = array<i64: 1, 32>}, {pipeline_mode = #tpu.pipeline_mode<synchronous>, transform_indices = @transform_3, window_bounds = array<i64: 32, 32>}, {pipeline_mode = #tpu.pipeline_mode<synchronous>, transform_indices = @transform_4, window_bounds = array<i64: 1, 32>}, {pipeline_mode = #tpu.pipeline_mode<synchronous>, transform_indices = @transform_5, window_bounds = array<i64: 32, 8>}, {pipeline_mode = #tpu.pipeline_mode<synchronous>, transform_indices = @transform_6, window_bounds = array<i64: 1, 8>}, {transform_indices = @transform_7, window_bounds = array<i64: 256, 8>}]} {
    %c0 = arith.constant 0 : index
    %c0_0 = arith.constant 0 : index
    %0 = vector.load %arg1[%c0, %c0_0] : memref<256x32xf32, #tpu.memory_space<vmem>>, vector<256x32xf32>
    %c0_1 = arith.constant 0 : index
    %c0_2 = arith.constant 0 : index
    %1 = vector.load %arg2[%c0_1, %c0_2] : memref<32x32xf32, #tpu.memory_space<vmem>>, vector<32x32xf32>
    %cst = arith.constant dense<0.000000e+00> : vector<256x32xf32>
    %2 = tpu.matmul %0, %1, %cst {dimension_numbers = #tpu.dot_dimension_numbers<[1], [0], [0], [1], [0, 0, 1, 1], [], []>} : vector<256x32xf32>, vector<32x32xf32>, vector<256x32xf32> -> vector<256x32xf32>
    %c0_3 = arith.constant 0 : index
    %c0_4 = arith.constant 0 : index
    %3 = vector.load %arg3[%c0_3, %c0_4] : memref<1x32xf32, #tpu.memory_space<vmem>>, vector<1x32xf32>
    %4 = vector.broadcast %3 : vector<1x32xf32> to vector<256x32xf32>
    %5 = arith.addf %2, %4 : vector<256x32xf32>
    %6 = math.tanh %5 : vector<256x32xf32>
    %c0_5 = arith.constant 0 : index
    %c0_6 = arith.constant 0 : index
    %7 = vector.load %arg4[%c0_5, %c0_6] : memref<32x32xf32, #tpu.memory_space<vmem>>, vector<32x32xf32>
    %cst_7 = arith.constant dense<0.000000e+00> : vector<256x32xf32>
    %8 = tpu.matmul %6, %7, %cst_7 {dimension_numbers = #tpu.dot_dimension_numbers<[1], [0], [0], [1], [0, 0, 1, 1], [], []>} : vector<256x32xf32>, vector<32x32xf32>, vector<256x32xf32> -> vector<256x32xf32>
    %c0_8 = arith.constant 0 : index
    %c0_9 = arith.constant 0 : index
    %9 = vector.load %arg5[%c0_8, %c0_9] : memref<1x32xf32, #tpu.memory_space<vmem>>, vector<1x32xf32>
    %10 = vector.broadcast %9 : vector<1x32xf32> to vector<256x32xf32>
    %11 = arith.addf %8, %10 : vector<256x32xf32>
    %12 = math.tanh %11 : vector<256x32xf32>
    %c0_10 = arith.constant 0 : index
    %c0_11 = arith.constant 0 : index
    %13 = vector.load %arg6[%c0_10, %c0_11] : memref<32x8xf32, #tpu.memory_space<vmem>>, vector<32x8xf32>
    %cst_12 = arith.constant dense<0.000000e+00> : vector<256x8xf32>
    %14 = tpu.matmul %12, %13, %cst_12 {dimension_numbers = #tpu.dot_dimension_numbers<[1], [0], [0], [1], [0, 0, 1, 1], [], []>} : vector<256x32xf32>, vector<32x8xf32>, vector<256x8xf32> -> vector<256x8xf32>
    %c0_13 = arith.constant 0 : index
    %c0_14 = arith.constant 0 : index
    %15 = vector.load %arg7[%c0_13, %c0_14] : memref<1x8xf32, #tpu.memory_space<vmem>>, vector<1x8xf32>
    %16 = vector.broadcast %15 : vector<1x8xf32> to vector<256x8xf32>
    %17 = arith.addf %14, %16 : vector<256x8xf32>
    %c0_15 = arith.constant 0 : index
    %c0_16 = arith.constant 0 : index
    %18 = vector.load %arg8[%c0_15, %c0_16] : memref<256x8xf32, #tpu.memory_space<vmem>>, vector<256x8xf32>
    tpu.vector_store %arg8[%c0_15, %c0_16], %17 {strides = array<i32>} : memref<256x8xf32, #tpu.memory_space<vmem>>, vector<256x8xf32>,
    return
  }
  func.func @transform_0(%arg0: i32) -> (i32, i32) {
    %c0_i32 = arith.constant 0 : i32
    %c0_i32_0 = arith.constant 0 : i32
    return %arg0, %c0_i32 : i32, i32
  }
  func.func @transform_1(%arg0: i32) -> (i32, i32) {
    %c0_i32 = arith.constant 0 : i32
    %c0_i32_0 = arith.constant 0 : i32
    %c0_i32_1 = arith.constant 0 : i32
    return %c0_i32, %c0_i32_0 : i32, i32
  }
  func.func @transform_2(%arg0: i32) -> (i32, i32) {
    %c0_i32 = arith.constant 0 : i32
    %c0_i32_0 = arith.constant 0 : i32
    %c0_i32_1 = arith.constant 0 : i32
    return %c0_i32, %c0_i32_0 : i32, i32
  }
  func.func @transform_3(%arg0: i32) -> (i32, i32) {
    %c0_i32 = arith.constant 0 : i32
    %c0_i32_0 = arith.constant 0 : i32
    %c0_i32_1 = arith.constant 0 : i32
    return %c0_i32, %c0_i32_0 : i32, i32
  }
  func.func @transform_4(%arg0: i32) -> (i32, i32) {
    %c0_i32 = arith.constant 0 : i32
    %c0_i32_0 = arith.constant 0 : i32
    %c0_i32_1 = arith.constant 0 : i32
    return %c0_i32, %c0_i32_0 : i32, i32
  }
  func.func @transform_5(%arg0: i32) -> (i32, i32) {
    %c0_i32 = arith.constant 0 : i32
    %c0_i32_0 = arith.constant 0 : i32
    %c0_i32_1 = arith.constant 0 : i32
    return %c0_i32, %c0_i32_0 : i32, i32
  }
  func.func @transform_6(%arg0: i32) -> (i32, i32) {
    %c0_i32 = arith.constant 0 : i32
    %c0_i32_0 = arith.constant 0 : i32
    %c0_i32_1 = arith.constant 0 : i32
    return %c0_i32, %c0_i32_0 : i32, i32
  }
  func.func @transform_7(%arg0: i32) -> (i32, i32) {
    %c0_i32 = arith.constant 0 : i32
    %c0_i32_0 = arith.constant 0 : i32
    return %arg0, %c0_i32 : i32, i32
  }
}

</mosaic_0001>

<llo_original>
// kernel: tpu_custom_call.1
$region0: #{tpu_custom_call.1}
  #allocation0 [shape = 'u32[]', space=smem, size = 0x4, offset = 0x4, fixed_abs, tag = 'smem constant byte address 0x4 - core index']
  #allocation1 [shape = 'u32[72,128]{1,0:T(1,128)}', space=vmem, size = 0x9000, scoped, tag = 'internal scratch']
  %s0 = inlined_call_operand.vmem [shape: f32[1024,32], index: 0, kind: input, shape index: {}]
  %s1 = inlined_call_operand.vmem [shape: f32[32,32], index: 1, kind: input, shape index: {}]
  %s2 = inlined_call_operand.vmem [shape: f32[1,32], index: 2, kind: input, shape index: {}]
  %s3 = inlined_call_operand.vmem [shape: f32[32,32], index: 3, kind: input, shape index: {}]
  %s4 = inlined_call_operand.vmem [shape: f32[1,32], index: 4, kind: input, shape index: {}]
  %s5 = inlined_call_operand.vmem [shape: f32[32,8], index: 5, kind: input, shape index: {}]
  %s6 = inlined_call_operand.vmem [shape: f32[1,8], index: 6, kind: input, shape index: {}]
  %s7 = inlined_call_operand.vmem [shape: f32[1024,8], index: 7, kind: output, shape index: {}]
  %s8 = sld [smem:[#allocation0]]
  $region61: #{tpu_custom_call.1} parent=0
    _
  %s10 = ssub.s32 1, %s8
  %s11 = scalar_select 0, %s10, %s8
  loop: start=0, step=1, limit=6
  $region2: #{tpu_custom_call.1} parent=0 // loop_pre_header
    _
  $region3: #{tpu_custom_call.1} parent=0 // loop_header
    %s13 = sphi 0, %s17
    %p14 = scmp.ge.s32.totalorder %s13, 6
    %s23 = sphi 0, %s25
    %s26 = sphi 0, %s23
    %s27 = sphi 0, %s26
    %s43 = sphi 0, %s27
    %s47 = sphi 0, %s47
    %s49 = sphi 0, %s47
    %s50 = sphi 0, %s49
    %s64 = sphi 0, %s50
    %s68 = sphi 0, %s68
    %s70 = sphi 0, %s68
    %s71 = sphi 0, %s70
    %s85 = sphi 0, %s71
    %s89 = sphi 0, %s89
    %s91 = sphi 0, %s89
    %s92 = sphi 0, %s91
    %s106 = sphi 0, %s92
    %s110 = sphi 0, %s110
    %s112 = sphi 0, %s110
    %s113 = sphi 0, %s112
    %s127 = sphi 0, %s113
    %s131 = sphi 0, %s131
    %s133 = sphi 0, %s131
    %s134 = sphi 0, %s133
    %s148 = sphi 0, %s134
    %s152 = sphi 0, %s152
    %s154 = sphi 0, %s152
    %s155 = sphi 0, %s154
    %s169 = sphi 0, %s155
    %s175 = sphi 0, %s177
    %s178 = sphi 0, %s175
    %s179 = sphi 0, %s178
    %s195 = sphi 0, %s179
  $region4: #{tpu_custom_call.1} parent=0 // loop_header_branch
    %16 = sbr.rel (%p14) target = $region8
  $region5: #{tpu_custom_call.1} parent=0 // loop_body
    %s18 = ssub.s32 %s13, 1
    %s19 = ssub.s32 %s13, 2
    %s20 = sadd.s32 %s13, 1
    %s21 = ssub.s32 %s13, %s20
    %p22 = scmp.eq.s32.totalorder %s21, 0
    %s24 = sadd.s32 %s23, 1
    %s25 = scalar_select %p22, %s23, %s24
    %p28 = pneg %p22
    %p29 = scmp.eq.s32.totalorder %s13, 3
    %p30 = por %p28, %p29
    %p31 = scmp.ne.s32.totalorder %s23, %s26
    %p32 = scmp.eq.s32.totalorder %s13, 0
    %p33 = por %p31, %p32
    %p34 = scmp.ne.s32.totalorder %s23, %s26
    %p35 = scmp.eq.s32.totalorder %s18, 3
    %p36 = por %p34, %p35
    %p37 = scmp.ne.s32.totalorder %s26, %s27
    %p38 = scmp.eq.s32.totalorder %s18, 0
    %p39 = por %p37, %p38
    %p40 = scmp.ne.s32.totalorder %s26, %s27
    %p41 = scmp.eq.s32.totalorder %s19, 3
    %p42 = por %p40, %p41
    %p44 = scmp.ne.s32.totalorder %s27, %s43
    %p45 = scmp.eq.s32.totalorder %s19, 0
    %p46 = por %p44, %p45
    %s48 = sadd.s32 %s47, 1
    %p51 = scmp.eq.s32.totalorder %s13, 3
    %p52 = scmp.ne.s32.totalorder %s47, %s49
    %p53 = scmp.eq.s32.totalorder %s13, 0
    %p54 = por %p52, %p53
    %p55 = scmp.ne.s32.totalorder %s47, %s49
    %p56 = scmp.eq.s32.totalorder %s18, 3
    %p57 = por %p55, %p56
    %p58 = scmp.ne.s32.totalorder %s49, %s50
    %p59 = scmp.eq.s32.totalorder %s18, 0
    %p60 = por %p58, %p59
    %p61 = scmp.ne.s32.totalorder %s49, %s50
    %p62 = scmp.eq.s32.totalorder %s19, 3
    %p63 = por %p61, %p62
    %p65 = scmp.ne.s32.totalorder %s50, %s64
    %p66 = scmp.eq.s32.totalorder %s19, 0
    %p67 = por %p65, %p66
    %s69 = sadd.s32 %s68, 1
    %p72 = scmp.eq.s32.totalorder %s13, 3
    %p73 = scmp.ne.s32.totalorder %s68, %s70
    %p74 = scmp.eq.s32.totalorder %s13, 0
    %p75 = por %p73, %p74
    %p76 = scmp.ne.s32.totalorder %s68, %s70
    %p77 = scmp.eq.s32.totalorder %s18, 3
    %p78 = por %p76, %p77
    %p79 = scmp.ne.s32.totalorder %s70, %s71
    %p80 = scmp.eq.s32.totalorder %s18, 0
    %p81 = por %p79, %p80
    %p82 = scmp.ne.s32.totalorder %s70, %s71
    %p83 = scmp.eq.s32.totalorder %s19, 3
    %p84 = por %p82, %p83
    %p86 = scmp.ne.s32.totalorder %s71, %s85
    %p87 = scmp.eq.s32.totalorder %s19, 0
    %p88 = por %p86, %p87
    %s90 = sadd.s32 %s89, 1
    %p93 = scmp.eq.s32.totalorder %s13, 3
    %p94 = scmp.ne.s32.totalorder %s89, %s91
    %p95 = scmp.eq.s32.totalorder %s13, 0
    %p96 = por %p94, %p95
    %p97 = scmp.ne.s32.totalorder %s89, %s91
    %p98 = scmp.eq.s32.totalorder %s18, 3
    %p99 = por %p97, %p98
    %p100 = scmp.ne.s32.totalorder %s91, %s92
    %p101 = scmp.eq.s32.totalorder %s18, 0
    %p102 = por %p100, %p101
    %p103 = scmp.ne.s32.totalorder %s91, %s92
    %p104 = scmp.eq.s32.totalorder %s19, 3
    %p105 = por %p103, %p104
    %p107 = scmp.ne.s32.totalorder %s92, %s106
    %p108 = scmp.eq.s32.totalorder %s19, 0
    %p109 = por %p107, %p108
    %s111 = sadd.s32 %s110, 1
    %p114 = scmp.eq.s32.totalorder %s13, 3
    %p115 = scmp.ne.s32.totalorder %s110, %s112
    %p116 = scmp.eq.s32.totalorder %s13, 0
    %p117 = por %p115, %p116
    %p118 = scmp.ne.s32.totalorder %s110, %s112
    %p119 = scmp.eq.s32.totalorder %s18, 3
    %p120 = por %p118, %p119
    %p121 = scmp.ne.s32.totalorder %s112, %s113
    %p122 = scmp.eq.s32.totalorder %s18, 0
    %p123 = por %p121, %p122
    %p124 = scmp.ne.s32.totalorder %s112, %s113
    %p125 = scmp.eq.s32.totalorder %s19, 3
    %p126 = por %p124, %p125
    %p128 = scmp.ne.s32.totalorder %s113, %s127
    %p129 = scmp.eq.s32.totalorder %s19, 0
    %p130 = por %p128, %p129
    %s132 = sadd.s32 %s131, 1
    %p135 = scmp.eq.s32.totalorder %s13, 3
    %p136 = scmp.ne.s32.totalorder %s131, %s133
    %p137 = scmp.eq.s32.totalorder %s13, 0
    %p138 = por %p136, %p137
    %p139 = scmp.ne.s32.totalorder %s131, %s133
    %p140 = scmp.eq.s32.totalorder %s18, 3
    %p141 = por %p139, %p140
    %p142 = scmp.ne.s32.totalorder %s133, %s134
    %p143 = scmp.eq.s32.totalorder %s18, 0
    %p144 = por %p142, %p143
    %p145 = scmp.ne.s32.totalorder %s133, %s134
    %p146 = scmp.eq.s32.totalorder %s19, 3
    %p147 = por %p145, %p146
    %p149 = scmp.ne.s32.totalorder %s134, %s148
    %p150 = scmp.eq.s32.totalorder %s19, 0
    %p151 = por %p149, %p150
    %s153 = sadd.s32 %s152, 1
    %p156 = scmp.eq.s32.totalorder %s13, 3
    %p157 = scmp.ne.s32.totalorder %s152, %s154
    %p158 = scmp.eq.s32.totalorder %s13, 0
    %p159 = por %p157, %p158
    %p160 = scmp.ne.s32.totalorder %s152, %s154
    %p161 = scmp.eq.s32.totalorder %s18, 3
    %p162 = por %p160, %p161
    %p163 = scmp.ne.s32.totalorder %s154, %s155
    %p164 = scmp.eq.s32.totalorder %s18, 0
    %p165 = por %p163, %p164
    %p166 = scmp.ne.s32.totalorder %s154, %s155
    %p167 = scmp.eq.s32.totalorder %s19, 3
    %p168 = por %p166, %p167
    %p170 = scmp.ne.s32.totalorder %s155, %s169
    %p171 = scmp.eq.s32.totalorder %s19, 0
    %p172 = por %p170, %p171
    %s173 = ssub.s32 %s13, %s20
    %p174 = scmp.eq.s32.totalorder %s173, 0
    %s176 = sadd.s32 %s175, 1
    %s177 = scalar_select %p174, %s175, %s176
    %p180 = pneg %p174
    %p181 = scmp.eq.s32.totalorder %s13, 3
    %p182 = por %p180, %p181
    %p183 = scmp.ne.s32.totalorder %s175, %s178
    %p184 = scmp.eq.s32.totalorder %s13, 0
    %p185 = por %p183, %p184
    %p186 = scmp.ne.s32.totalorder %s175, %s178
    %p187 = scmp.eq.s32.totalorder %s18, 3
    %p188 = por %p186, %p187
    %p189 = scmp.ne.s32.totalorder %s178, %s179
    %p190 = scmp.eq.s32.totalorder %s18, 0
    %p191 = por %p189, %p190
    %p192 = scmp.ne.s32.totalorder %s178, %s179
    %p193 = scmp.eq.s32.totalorder %s19, 3
    %p194 = por %p192, %p193
    %p196 = scmp.ne.s32.totalorder %s179, %s195
    %p197 = scmp.eq.s32.totalorder %s19, 0
    %p198 = por %p196, %p197
    %p199 = scmp.le.s32.totalorder 1, %s13
    %p200 = scmp.lt.s32.totalorder %s13, 5
    %p201 = pnand %p199, %p200
    %p202 = pneg %p201
    // Predicated region
    $region9: #{tpu_custom_call.1} parent=5 // pred_check
      _
    $region10: #{tpu_custom_call.1} parent=5 // pred_check_branch
      %204 = sbr.rel (%p201) target = $region12
    $region11: #{tpu_custom_call.1} parent=5 // pred_region
      %s205 = ssub.s32 %s13, 1
      // Predicated region
      $region13: #{tpu_custom_call.1} parent=11 // pred_check
        %p206 = pneg %p60
      $region14: #{tpu_custom_call.1} parent=11 // pred_check_branch
        %208 = sbr.rel (%p206) target = $region16
      $region15: #{tpu_custom_call.1} parent=11 // pred_region
        _
      $region16: #{tpu_custom_call.1} parent=11 // pred_fallthru
        _
      // Predicated region
      $region17: #{tpu_custom_call.1} parent=11 // pred_check
        %p209 = pneg %p81
      $region18: #{tpu_custom_call.1} parent=11 // pred_check_branch
        %211 = sbr.rel (%p209) target = $region20
      $region19: #{tpu_custom_call.1} parent=11 // pred_region
        _
      $region20: #{tpu_custom_call.1} parent=11 // pred_fallthru
        _
      // Predicated region
      $region21: #{tpu_custom_call.1} parent=11 // pred_check
        %p212 = pneg %p102
      $region22: #{tpu_custom_call.1} parent=11 // pred_check_branch
        %214 = sbr.rel (%p212) target = $region24
      $region23: #{tpu_custom_call.1} parent=11 // pred_region
        _
      $region24: #{tpu_custom_call.1} parent=11 // pred_fallthru
        _
      // Predicated region
      $region25: #{tpu_custom_call.1} parent=11 // pred_check
        %p215 = pneg %p123
      $region26: #{tpu_custom_call.1} parent=11 // pred_check_branch
        %217 = sbr.rel (%p215) target = $region28
      $region27: #{tpu_custom_call.1} parent=11 // pred_region
        _
      $region28: #{tpu_custom_call.1} parent=11 // pred_fallthru
        _
      // Predicated region
      $region29: #{tpu_custom_call.1} parent=11 // pred_check
        %p218 = pneg %p144
      $region30: #{tpu_custom_call.1} parent=11 // pred_check_branch
        %220 = sbr.rel (%p218) target = $region32
      $region31: #{tpu_custom_call.1} parent=11 // pred_region
        _
      $region32: #{tpu_custom_call.1} parent=11 // pred_fallthru
        _
      // Predicated region
      $region33: #{tpu_custom_call.1} parent=11 // pred_check
        %p221 = pneg %p165
      $region34: #{tpu_custom_call.1} parent=11 // pred_check_branch
        %223 = sbr.rel (%p221) target = $region36
      $region35: #{tpu_custom_call.1} parent=11 // pred_region
        _
      $region36: #{tpu_custom_call.1} parent=11 // pred_fallthru
        _
    $region12: #{tpu_custom_call.1} parent=5 // pred_fallthru
      _
    %p224 = scmp.lt.s32.totalorder %s13, 4
    // Predicated region
    $region37: #{tpu_custom_call.1} parent=5 // pred_check
      %p225 = pneg %p224
    $region38: #{tpu_custom_call.1} parent=5 // pred_check_branch
      %227 = sbr.rel (%p225) target = $region40
    $region39: #{tpu_custom_call.1} parent=5 // pred_region
      // Predicated region
      $region41: #{tpu_custom_call.1} parent=39 // pred_check
        %p228 = pneg %p33
      $region42: #{tpu_custom_call.1} parent=39 // pred_check_branch
        %230 = sbr.rel (%p228) target = $region44
      $region43: #{tpu_custom_call.1} parent=39 // pred_region
        %s231 = smul.u32 32, %s13
        %p232 = scmp.lt.s32.totalorder %s231, 127
        %s233 = scalar_select %p232, %s231, 127
        %s234 = smul.addr %s233, 8
        %s235 = scalar_lea.vmem %s0, %s234
        %s236 = smul.u32 32, %s13
      $region44: #{tpu_custom_call.1} parent=39 // pred_fallthru
        _
    $region40: #{tpu_custom_call.1} parent=5 // pred_fallthru
      _
    %p237 = scmp.le.s32.totalorder 1, %s13
    %p238 = scmp.lt.s32.totalorder %s13, 5
    %p239 = pnand %p237, %p238
    %p240 = pneg %p239
    // Predicated region
    $region45: #{tpu_custom_call.1} parent=5 // pred_check
      _
    $region46: #{tpu_custom_call.1} parent=5 // pred_check_branch
      %242 = sbr.rel (%p239) target = $region48
    $region47: #{tpu_custom_call.1} parent=5 // pred_region
      %s243 = ssub.s32 %s13, 1
      %s244 = smul.u32 32, %s18
      %p245 = scmp.lt.s32.totalorder %s244, 127
      %s246 = scalar_select %p245, %s244, 127
      %s247 = smul.addr %s246, 8
      %s248 = scalar_lea.vmem %s0, %s247
      %p249 = pneg %p39
      %p250 = pneg %p36
      %p251 = pneg %p60
      %p252 = pneg %p57
      %p253 = pneg %p81
      %p254 = pneg %p78
      %p255 = pneg %p102
      %p256 = pneg %p99
      %p257 = pneg %p123
      %p258 = pneg %p120
      %p259 = pneg %p144
      %p260 = pneg %p141
      %p261 = pneg %p165
      %p262 = pneg %p162
      %p263 = pneg %p191
      %p264 = pneg %p188
      %s265 = smul.u32 32, %s18
      %p266 = scmp.lt.s32.totalorder %s265, 127
      %s267 = scalar_select %p266, %s265, 127
      %s268 = smul.addr %s267, 8
      %s269 = scalar_lea.vmem %s7, %s268
      %s270 = smul.u32 32, %s18
      %p271 = scmp.lt.s32.totalorder %s270, 127
      %s272 = scalar_select %p271, %s270, 127
      %s273 = smul.addr %s272, 8
      %s274 = scalar_lea.vmem %s0, %s273
      %s275 = smul.u32 32, %s18
      %s276 = smul.u32 32, %s18
      %p277 = scmp.lt.s32.totalorder %s276, 127
      %s278 = scalar_select %p277, %s276, 127
      %s279 = smul.addr %s278, 8
      %s280 = scalar_lea.vmem %s7, %s279
      %s281 = smul.u32 32, %s18
      %v282 = vld [vmem:[%s274] sm:$0xff]
      %v283 = vld [vmem:[%s274 + $0x8] sm:$0xff]
      %v284 = vld [vmem:[%s274 + $0x10] sm:$0xff]
      %v285 = vld [vmem:[%s274 + $0x18] sm:$0xff]
      %v286 = vld [vmem:[%s274 + $0x20] sm:$0xff]
      %v287 = vld [vmem:[%s274 + $0x28] sm:$0xff]
      %v288 = vld [vmem:[%s274 + $0x30] sm:$0xff]
      %v289 = vld [vmem:[%s274 + $0x38] sm:$0xff]
      %v290 = vld [vmem:[%s274 + $0x40] sm:$0xff]
      %v291 = vld [vmem:[%s274 + $0x48] sm:$0xff]
      %v292 = vld [vmem:[%s274 + $0x50] sm:$0xff]
      %v293 = vld [vmem:[%s274 + $0x58] sm:$0xff]
      %v294 = vld [vmem:[%s274 + $0x60] sm:$0xff]
      %v295 = vld [vmem:[%s274 + $0x68] sm:$0xff]
      %v296 = vld [vmem:[%s274 + $0x70] sm:$0xff]
      %v297 = vld [vmem:[%s274 + $0x78] sm:$0xff]
      %v298 = vld [vmem:[%s274 + $0x80] sm:$0xff]
      %v299 = vld [vmem:[%s274 + $0x88] sm:$0xff]
      %v300 = vld [vmem:[%s274 + $0x90] sm:$0xff]
      %v301 = vld [vmem:[%s274 + $0x98] sm:$0xff]
      %v302 = vld [vmem:[%s274 + $0xa0] sm:$0xff]
      %v303 = vld [vmem:[%s274 + $0xa8] sm:$0xff]
      %v304 = vld [vmem:[%s274 + $0xb0] sm:$0xff]
      %v305 = vld [vmem:[%s274 + $0xb8] sm:$0xff]
      %v306 = vld [vmem:[%s274 + $0xc0] sm:$0xff]
      %v307 = vld [vmem:[%s274 + $0xc8] sm:$0xff]
      %v308 = vld [vmem:[%s274 + $0xd0] sm:$0xff]
      %v309 = vld [vmem:[%s274 + $0xd8] sm:$0xff]
      %v310 = vld [vmem:[%s274 + $0xe0] sm:$0xff]
      %v311 = vld [vmem:[%s274 + $0xe8] sm:$0xff]
      %v312 = vld [vmem:[%s274 + $0xf0] sm:$0xff]
      %v313 = vld [vmem:[%s274 + $0xf8] sm:$0xff]
      %v314 = vld [vmem:[%s1] sm:$0xff]
      %v315 = vld [vmem:[%s1 + $0x8] sm:$0xff]
      %v316 = vld [vmem:[%s1 + $0x10] sm:$0xff]
      %v317 = vld [vmem:[%s1 + $0x18] sm:$0xff]
      %v318 = vld [vmem:[%s2] sm:$0x1]
      %v320 = vperm.slane %v318, 0
      %vm322 = vcmask 261120
      %v324 = vsel %vm322, %v282, 0
      %v327 = vsel %vm322, %v283, 0
      %v330 = vsel %vm322, %v284, 0
      %v333 = vsel %vm322, %v285, 0
      %v336 = vsel %vm322, %v286, 0
      %v339 = vsel %vm322, %v287, 0
      %v342 = vsel %vm322, %v288, 0
      %v345 = vsel %vm322, %v289, 0
      %v348 = vsel %vm322, %v290, 0
      %v351 = vsel %vm322, %v291, 0
      %v354 = vsel %vm322, %v292, 0
      %v357 = vsel %vm322, %v293, 0
      %v360 = vsel %vm322, %v294, 0
      %v363 = vsel %vm322, %v295, 0
      %v366 = vsel %vm322, %v296, 0
      %v369 = vsel %vm322, %v297, 0
      %v372 = vsel %vm322, %v298, 0
      %v375 = vsel %vm322, %v299, 0
      %v378 = vsel %vm322, %v300, 0
      %v381 = vsel %vm322, %v301, 0
      %v384 = vsel %vm322, %v302, 0
      %v387 = vsel %vm322, %v303, 0
      %v390 = vsel %vm322, %v304, 0
      %v393 = vsel %vm322, %v305, 0
      %v396 = vsel %vm322, %v306, 0
      %v399 = vsel %vm322, %v307, 0
      %v402 = vsel %vm322, %v308, 0
      %v405 = vsel %vm322, %v309, 0
      %v408 = vsel %vm322, %v310, 0
      %v411 = vsel %vm322, %v311, 0
      %v414 = vsel %vm322, %v312, 0
      %v417 = vsel %vm322, %v313, 0
      %419 = vmatpush.msra.mxu0 0.0
      %420 = vmatpush.msra.mxu0 0.0
      %421 = vmatpush.msra.mxu0 0.0
      %422 = vmatpush.msra.mxu0 0.0
      %423 = vmatpush.msra.mxu0 0.0
      %424 = vmatpush.msra.mxu0 0.0
      %425 = vmatpush.msra.mxu0 0.0
      %426 = vmatpush.msra.mxu0 0.0
      %427 = vmatpush.msra.mxu0 0.0
      %428 = vmatpush.msra.mxu0 0.0
      %429 = vmatpush.msra.mxu0 0.0
      %430 = vmatpush.msra.mxu0 0.0
      %431 = vmatpush.msra.mxu0 %v317
      %432 = vmatpush.msra.mxu0 %v316
      %433 = vmatpush.msra.mxu0 %v315
      %434 = vmatpush.msra.mxu0 %v314
      %435 = vmatmul.f32.gmra.mxu0 %v324
      %v436 = vpop.f32.mrf.mxu0
      %v437 = vadd.f32 %v320, %v436
      %438 = vmatmul.f32.gmra.mxu0 %v327
      %v439 = vpop.f32.mrf.mxu0
      %v440 = vadd.f32 %v320, %v439
      %441 = vmatmul.f32.gmra.mxu0 %v330
      %v442 = vpop.f32.mrf.mxu0
      %v443 = vadd.f32 %v320, %v442
      %444 = vmatmul.f32.gmra.mxu0 %v333
      %v445 = vpop.f32.mrf.mxu0
      %v446 = vadd.f32 %v320, %v445
      %447 = vmatmul.f32.gmra.mxu0 %v336
      %v448 = vpop.f32.mrf.mxu0
      %v449 = vadd.f32 %v320, %v448
      %450 = vmatmul.f32.gmra.mxu0 %v339
      %v451 = vpop.f32.mrf.mxu0
      %v452 = vadd.f32 %v320, %v451
      %453 = vmatmul.f32.gmra.mxu0 %v342
      %v454 = vpop.f32.mrf.mxu0
      %v455 = vadd.f32 %v320, %v454
      %456 = vmatmul.f32.gmra.mxu0 %v345
      %v457 = vpop.f32.mrf.mxu0
      %v458 = vadd.f32 %v320, %v457
      %459 = vmatmul.f32.gmra.mxu0 %v348
      %v460 = vpop.f32.mrf.mxu0
      %v461 = vadd.f32 %v320, %v460
      %462 = vmatmul.f32.gmra.mxu0 %v351
      %v463 = vpop.f32.mrf.mxu0
      %v464 = vadd.f32 %v320, %v463
      %465 = vmatmul.f32.gmra.mxu0 %v354
      %v466 = vpop.f32.mrf.mxu0
      %v467 = vadd.f32 %v320, %v466
      %468 = vmatmul.f32.gmra.mxu0 %v357
      %v469 = vpop.f32.mrf.mxu0
      %v470 = vadd.f32 %v320, %v469
      %471 = vmatmul.f32.gmra.mxu0 %v360
      %v472 = vpop.f32.mrf.mxu0
      %v473 = vadd.f32 %v320, %v472
      %474 = vmatmul.f32.gmra.mxu0 %v363
      %v475 = vpop.f32.mrf.mxu0
      %v476 = vadd.f32 %v320, %v475
      %477 = vmatmul.f32.gmra.mxu0 %v366
      %v478 = vpop.f32.mrf.mxu0
      %v479 = vadd.f32 %v320, %v478
      %480 = vmatmul.f32.gmra.mxu0 %v369
      %v481 = vpop.f32.mrf.mxu0
      %v482 = vadd.f32 %v320, %v481
      %483 = vmatmul.f32.gmra.mxu0 %v372
      %v484 = vpop.f32.mrf.mxu0
      %v485 = vadd.f32 %v320, %v484
      %486 = vmatmul.f32.gmra.mxu0 %v375
      %v487 = vpop.f32.mrf.mxu0
      %v488 = vadd.f32 %v320, %v487
      %489 = vmatmul.f32.gmra.mxu0 %v378
      %v490 = vpop.f32.mrf.mxu0
      %v491 = vadd.f32 %v320, %v490
      %492 = vmatmul.f32.gmra.mxu0 %v381
      %v493 = vpop.f32.mrf.mxu0
      %v494 = vadd.f32 %v320, %v493
      %495 = vmatmul.f32.gmra.mxu0 %v384
      %v496 = vpop.f32.mrf.mxu0
      %v497 = vadd.f32 %v320, %v496
      %498 = vmatmul.f32.gmra.mxu0 %v387
      %v499 = vpop.f32.mrf.mxu0
      %v500 = vadd.f32 %v320, %v499
      %501 = vmatmul.f32.gmra.mxu0 %v390
      %v502 = vpop.f32.mrf.mxu0
      %v503 = vadd.f32 %v320, %v502
      %504 = vmatmul.f32.gmra.mxu0 %v393
      %v505 = vpop.f32.mrf.mxu0
      %v506 = vadd.f32 %v320, %v505
      %507 = vmatmul.f32.gmra.mxu0 %v396
      %v508 = vpop.f32.mrf.mxu0
      %v509 = vadd.f32 %v320, %v508
      %510 = vmatmul.f32.gmra.mxu0 %v399
      %v511 = vpop.f32.mrf.mxu0
      %v512 = vadd.f32 %v320, %v511
      %513 = vmatmul.f32.gmra.mxu0 %v402
      %v514 = vpop.f32.mrf.mxu0
      %v515 = vadd.f32 %v320, %v514
      %516 = vmatmul.f32.gmra.mxu0 %v405
      %v517 = vpop.f32.mrf.mxu0
      %v518 = vadd.f32 %v320, %v517
      %519 = vmatmul.f32.gmra.mxu0 %v408
      %v520 = vpop.f32.mrf.mxu0
      %v521 = vadd.f32 %v320, %v520
      %522 = vmatmul.f32.gmra.mxu0 %v411
      %v523 = vpop.f32.mrf.mxu0
      %v524 = vadd.f32 %v320, %v523
      %525 = vmatmul.f32.gmra.mxu0 %v414
      %v526 = vpop.f32.mrf.mxu0
      %v527 = vadd.f32 %v320, %v526
      %528 = vmatmul.f32.gmra.mxu0 %v417
      %v529 = vpop.f32.mrf.mxu0
      %v530 = vadd.f32 %v320, %v529
      %531 = vdwg.mxu0
      %v532 = vtanh.pop %v437
      %v533 = vtanh.pop %v440
      %v534 = vtanh.pop %v443
      %v535 = vtanh.pop %v446
      %v536 = vtanh.pop %v449
      %v537 = vtanh.pop %v452
      %v538 = vtanh.pop %v455
      %v539 = vtanh.pop %v458
      %v540 = vtanh.pop %v461
      %v541 = vtanh.pop %v464
      %v542 = vtanh.pop %v467
      %v543 = vtanh.pop %v470
      %v544 = vtanh.pop %v473
      %v545 = vtanh.pop %v476
      %v546 = vtanh.pop %v479
      %v547 = vtanh.pop %v482
      %v548 = vtanh.pop %v485
      %v549 = vtanh.pop %v488
      %v550 = vtanh.pop %v491
      %v551 = vtanh.pop %v494
      %v552 = vtanh.pop %v497
      %v553 = vtanh.pop %v500
      %v554 = vtanh.pop %v503
      %v555 = vtanh.pop %v506
      %v556 = vtanh.pop %v509
      %v557 = vtanh.pop %v512
      %v558 = vtanh.pop %v515
      %v559 = vtanh.pop %v518
      %v560 = vtanh.pop %v521
      %v561 = vtanh.pop %v524
      %v562 = vtanh.pop %v527
      %v563 = vtanh.pop %v530
      %v564 = vld [vmem:[%s3] sm:$0xff]
      %v565 = vld [vmem:[%s3 + $0x8] sm:$0xff]
      %v566 = vld [vmem:[%s3 + $0x10] sm:$0xff]
      %v567 = vld [vmem:[%s3 + $0x18] sm:$0xff]
      %v568 = vld [vmem:[%s4] sm:$0x1]
      %v570 = vperm.slane %v568, 0
      %v573 = vsel %vm322, %v532, 0
      %v576 = vsel %vm322, %v533, 0
      %v579 = vsel %vm322, %v534, 0
      %v582 = vsel %vm322, %v535, 0
      %v585 = vsel %vm322, %v536, 0
      %v588 = vsel %vm322, %v537, 0
      %v591 = vsel %vm322, %v538, 0
      %v594 = vsel %vm322, %v539, 0
      %v597 = vsel %vm322, %v540, 0
      %v600 = vsel %vm322, %v541, 0
      %v603 = vsel %vm322, %v542, 0
      %v606 = vsel %vm322, %v543, 0
      %v609 = vsel %vm322, %v544, 0
      %v612 = vsel %vm322, %v545, 0
      %v615 = vsel %vm322, %v546, 0
      %v618 = vsel %vm322, %v547, 0
      %v621 = vsel %vm322, %v548, 0
      %v624 = vsel %vm322, %v549, 0
      %v627 = vsel %vm322, %v550, 0
      %v630 = vsel %vm322, %v551, 0
      %v633 = vsel %vm322, %v552, 0
      %v636 = vsel %vm322, %v553, 0
      %v639 = vsel %vm322, %v554, 0
      %v642 = vsel %vm322, %v555, 0
      %v645 = vsel %vm322, %v556, 0
      %v648 = vsel %vm322, %v557, 0
      %v651 = vsel %vm322, %v558, 0
      %v654 = vsel %vm322, %v559, 0
      %v657 = vsel %vm322, %v560, 0
      %v660 = vsel %vm322, %v561, 0
      %v663 = vsel %vm322, %v562, 0
      %v666 = vsel %vm322, %v563, 0
      %668 = vmatpush.msra.mxu0 0.0
      %669 = vmatpush.msra.mxu0 0.0
      %670 = vmatpush.msra.mxu0 0.0
      %671 = vmatpush.msra.mxu0 0.0
      %672 = vmatpush.msra.mxu0 0.0
      %673 = vmatpush.msra.mxu0 0.0
      %674 = vmatpush.msra.mxu0 0.0
      %675 = vmatpush.msra.mxu0 0.0
      %676 = vmatpush.msra.mxu0 0.0
      %677 = vmatpush.msra.mxu0 0.0
      %678 = vmatpush.msra.mxu0 0.0
      %679 = vmatpush.msra.mxu0 0.0
      %680 = vmatpush.msra.mxu0 %v567
      %681 = vmatpush.msra.mxu0 %v566
      %682 = vmatpush.msra.mxu0 %v565
      %683 = vmatpush.msra.mxu0 %v564
      %684 = vmatmul.f32.gmra.mxu0 %v573
      %v685 = vpop.f32.mrf.mxu0
      %v686 = vadd.f32 %v570, %v685
      %687 = vmatmul.f32.gmra.mxu0 %v576
      %v688 = vpop.f32.mrf.mxu0
      %v689 = vadd.f32 %v570, %v688
      %690 = vmatmul.f32.gmra.mxu0 %v579
      %v691 = vpop.f32.mrf.mxu0
      %v692 = vadd.f32 %v570, %v691
      %693 = vmatmul.f32.gmra.mxu0 %v582
      %v694 = vpop.f32.mrf.mxu0
      %v695 = vadd.f32 %v570, %v694
      %696 = vmatmul.f32.gmra.mxu0 %v585
      %v697 = vpop.f32.mrf.mxu0
      %v698 = vadd.f32 %v570, %v697
      %699 = vmatmul.f32.gmra.mxu0 %v588
      %v700 = vpop.f32.mrf.mxu0
      %v701 = vadd.f32 %v570, %v700
      %702 = vmatmul.f32.gmra.mxu0 %v591
      %v703 = vpop.f32.mrf.mxu0
      %v704 = vadd.f32 %v570, %v703
      %705 = vmatmul.f32.gmra.mxu0 %v594
      %v706 = vpop.f32.mrf.mxu0
      %v707 = vadd.f32 %v570, %v706
      %708 = vmatmul.f32.gmra.mxu0 %v597
      %v709 = vpop.f32.mrf.mxu0
      %v710 = vadd.f32 %v570, %v709
      %711 = vmatmul.f32.gmra.mxu0 %v600
      %v712 = vpop.f32.mrf.mxu0
      %v713 = vadd.f32 %v570, %v712
      %714 = vmatmul.f32.gmra.mxu0 %v603
      %v715 = vpop.f32.mrf.mxu0
      %v716 = vadd.f32 %v570, %v715
      %717 = vmatmul.f32.gmra.mxu0 %v606
      %v718 = vpop.f32.mrf.mxu0
      %v719 = vadd.f32 %v570, %v718
      %720 = vmatmul.f32.gmra.mxu0 %v609
      %v721 = vpop.f32.mrf.mxu0
      %v722 = vadd.f32 %v570, %v721
      %723 = vmatmul.f32.gmra.mxu0 %v612
      %v724 = vpop.f32.mrf.mxu0
      %v725 = vadd.f32 %v570, %v724
      %726 = vmatmul.f32.gmra.mxu0 %v615
      %v727 = vpop.f32.mrf.mxu0
      %v728 = vadd.f32 %v570, %v727
      %729 = vmatmul.f32.gmra.mxu0 %v618
      %v730 = vpop.f32.mrf.mxu0
      %v731 = vadd.f32 %v570, %v730
      %732 = vmatmul.f32.gmra.mxu0 %v621
      %v733 = vpop.f32.mrf.mxu0
      %v734 = vadd.f32 %v570, %v733
      %735 = vmatmul.f32.gmra.mxu0 %v624
      %v736 = vpop.f32.mrf.mxu0
      %v737 = vadd.f32 %v570, %v736
      %738 = vmatmul.f32.gmra.mxu0 %v627
      %v739 = vpop.f32.mrf.mxu0
      %v740 = vadd.f32 %v570, %v739
      %741 = vmatmul.f32.gmra.mxu0 %v630
      %v742 = vpop.f32.mrf.mxu0
      %v743 = vadd.f32 %v570, %v742
      %744 = vmatmul.f32.gmra.mxu0 %v633
      %v745 = vpop.f32.mrf.mxu0
      %v746 = vadd.f32 %v570, %v745
      %747 = vmatmul.f32.gmra.mxu0 %v636
      %v748 = vpop.f32.mrf.mxu0
      %v749 = vadd.f32 %v570, %v748
      %750 = vmatmul.f32.gmra.mxu0 %v639
      %v751 = vpop.f32.mrf.mxu0
      %v752 = vadd.f32 %v570, %v751
      %753 = vmatmul.f32.gmra.mxu0 %v642
      %v754 = vpop.f32.mrf.mxu0
      %v755 = vadd.f32 %v570, %v754
      %756 = vmatmul.f32.gmra.mxu0 %v645
      %v757 = vpop.f32.mrf.mxu0
      %v758 = vadd.f32 %v570, %v757
      %759 = vmatmul.f32.gmra.mxu0 %v648
      %v760 = vpop.f32.mrf.mxu0
      %v761 = vadd.f32 %v570, %v760
      %762 = vmatmul.f32.gmra.mxu0 %v651
      %v763 = vpop.f32.mrf.mxu0
      %v764 = vadd.f32 %v570, %v763
      %765 = vmatmul.f32.gmra.mxu0 %v654
      %v766 = vpop.f32.mrf.mxu0
      %v767 = vadd.f32 %v570, %v766
      %768 = vmatmul.f32.gmra.mxu0 %v657
      %v769 = vpop.f32.mrf.mxu0
      %v770 = vadd.f32 %v570, %v769
      %771 = vmatmul.f32.gmra.mxu0 %v660
      %v772 = vpop.f32.mrf.mxu0
      %v773 = vadd.f32 %v570, %v772
      %774 = vmatmul.f32.gmra.mxu0 %v663
      %v775 = vpop.f32.mrf.mxu0
      %v776 = vadd.f32 %v570, %v775
      %777 = vmatmul.f32.gmra.mxu0 %v666
      %v778 = vpop.f32.mrf.mxu0
      %v779 = vadd.f32 %v570, %v778
      %780 = vdwg.mxu0
      %v781 = vtanh.pop %v686
      %v782 = vtanh.pop %v689
      %v783 = vtanh.pop %v692
      %v784 = vtanh.pop %v695
      %v785 = vtanh.pop %v698
      %v786 = vtanh.pop %v701
      %v787 = vtanh.pop %v704
      %v788 = vtanh.pop %v707
      %v789 = vtanh.pop %v710
      %v790 = vtanh.pop %v713
      %v791 = vtanh.pop %v716
      %v792 = vtanh.pop %v719
      %v793 = vtanh.pop %v722
      %v794 = vtanh.pop %v725
      %v795 = vtanh.pop %v728
      %v796 = vtanh.pop %v731
      %v797 = vtanh.pop %v734
      %v798 = vtanh.pop %v737
      %v799 = vtanh.pop %v740
      %v800 = vtanh.pop %v743
      %v801 = vtanh.pop %v746
      %v802 = vtanh.pop %v749
      %v803 = vtanh.pop %v752
      %v804 = vtanh.pop %v755
      %v805 = vtanh.pop %v758
      %v806 = vtanh.pop %v761
      %v807 = vtanh.pop %v764
      %v808 = vtanh.pop %v767
      %v809 = vtanh.pop %v770
      %v810 = vtanh.pop %v773
      %v811 = vtanh.pop %v776
      %v812 = vtanh.pop %v779
      %v813 = vld [vmem:[%s5] sm:$0xff]
      %v814 = vld [vmem:[%s5 + $0x8] sm:$0xff]
      %v815 = vld [vmem:[%s5 + $0x10] sm:$0xff]
      %v816 = vld [vmem:[%s5 + $0x18] sm:$0xff]
      %v817 = vld [vmem:[%s6] sm:$0x1]
      %v819 = vperm.slane %v817, 0
      %v822 = vsel %vm322, %v781, 0
      %v825 = vsel %vm322, %v782, 0
      %v828 = vsel %vm322, %v783, 0
      %v831 = vsel %vm322, %v784, 0
      %v834 = vsel %vm322, %v785, 0
      %v837 = vsel %vm322, %v786, 0
      %v840 = vsel %vm322, %v787, 0
      %v843 = vsel %vm322, %v788, 0
      %v846 = vsel %vm322, %v789, 0
      %v849 = vsel %vm322, %v790, 0
      %v852 = vsel %vm322, %v791, 0
      %v855 = vsel %vm322, %v792, 0
      %v858 = vsel %vm322, %v793, 0
      %v861 = vsel %vm322, %v794, 0
      %v864 = vsel %vm322, %v795, 0
      %v867 = vsel %vm322, %v796, 0
      %v870 = vsel %vm322, %v797, 0
      %v873 = vsel %vm322, %v798, 0
      %v876 = vsel %vm322, %v799, 0
      %v879 = vsel %vm322, %v800, 0
      %v882 = vsel %vm322, %v801, 0
      %v885 = vsel %vm322, %v802, 0
      %v888 = vsel %vm322, %v803, 0
      %v891 = vsel %vm322, %v804, 0
      %v894 = vsel %vm322, %v805, 0
      %v897 = vsel %vm322, %v806, 0
      %v900 = vsel %vm322, %v807, 0
      %v903 = vsel %vm322, %v808, 0
      %v906 = vsel %vm322, %v809, 0
      %v909 = vsel %vm322, %v810, 0
      %v912 = vsel %vm322, %v811, 0
      %v915 = vsel %vm322, %v812, 0
      %917 = vmatpush.msra.mxu0 0.0
      %918 = vmatpush.msra.mxu0 0.0
      %919 = vmatpush.msra.mxu0 0.0
      %920 = vmatpush.msra.mxu0 0.0
      %921 = vmatpush.msra.mxu0 0.0
      %922 = vmatpush.msra.mxu0 0.0
      %923 = vmatpush.msra.mxu0 0.0
      %924 = vmatpush.msra.mxu0 0.0
      %925 = vmatpush.msra.mxu0 0.0
      %926 = vmatpush.msra.mxu0 0.0
      %927 = vmatpush.msra.mxu0 0.0
      %928 = vmatpush.msra.mxu0 0.0
      %929 = vmatpush.msra.mxu0 %v816
      %930 = vmatpush.msra.mxu0 %v815
      %931 = vmatpush.msra.mxu0 %v814
      %932 = vmatpush.msra.mxu0 %v813
      %933 = vmatmul.f32.gmra.mxu0 %v822
      %v934 = vpop.f32.mrf.mxu0
      %v935 = vadd.f32 %v819, %v934
      %936 = vmatmul.f32.gmra.mxu0 %v825
      %v937 = vpop.f32.mrf.mxu0
      %v938 = vadd.f32 %v819, %v937
      %939 = vmatmul.f32.gmra.mxu0 %v828
      %v940 = vpop.f32.mrf.mxu0
      %v941 = vadd.f32 %v819, %v940
      %942 = vmatmul.f32.gmra.mxu0 %v831
      %v943 = vpop.f32.mrf.mxu0
      %v944 = vadd.f32 %v819, %v943
      %945 = vmatmul.f32.gmra.mxu0 %v834
      %v946 = vpop.f32.mrf.mxu0
      %v947 = vadd.f32 %v819, %v946
      %948 = vmatmul.f32.gmra.mxu0 %v837
      %v949 = vpop.f32.mrf.mxu0
      %v950 = vadd.f32 %v819, %v949
      %951 = vmatmul.f32.gmra.mxu0 %v840
      %v952 = vpop.f32.mrf.mxu0
      %v953 = vadd.f32 %v819, %v952
      %954 = vmatmul.f32.gmra.mxu0 %v843
      %v955 = vpop.f32.mrf.mxu0
      %v956 = vadd.f32 %v819, %v955
      %957 = vmatmul.f32.gmra.mxu0 %v846
      %v958 = vpop.f32.mrf.mxu0
      %v959 = vadd.f32 %v819, %v958
      %960 = vmatmul.f32.gmra.mxu0 %v849
      %v961 = vpop.f32.mrf.mxu0
      %v962 = vadd.f32 %v819, %v961
      %963 = vmatmul.f32.gmra.mxu0 %v852
      %v964 = vpop.f32.mrf.mxu0
      %v965 = vadd.f32 %v819, %v964
      %966 = vmatmul.f32.gmra.mxu0 %v855
      %v967 = vpop.f32.mrf.mxu0
      %v968 = vadd.f32 %v819, %v967
      %969 = vmatmul.f32.gmra.mxu0 %v858
      %v970 = vpop.f32.mrf.mxu0
      %v971 = vadd.f32 %v819, %v970
      %972 = vmatmul.f32.gmra.mxu0 %v861
      %v973 = vpop.f32.mrf.mxu0
      %v974 = vadd.f32 %v819, %v973
      %975 = vmatmul.f32.gmra.mxu0 %v864
      %v976 = vpop.f32.mrf.mxu0
      %v977 = vadd.f32 %v819, %v976
      %978 = vmatmul.f32.gmra.mxu0 %v867
      %v979 = vpop.f32.mrf.mxu0
      %v980 = vadd.f32 %v819, %v979
      %981 = vmatmul.f32.gmra.mxu0 %v870
      %v982 = vpop.f32.mrf.mxu0
      %v983 = vadd.f32 %v819, %v982
      %984 = vmatmul.f32.gmra.mxu0 %v873
      %v985 = vpop.f32.mrf.mxu0
      %v986 = vadd.f32 %v819, %v985
      %987 = vmatmul.f32.gmra.mxu0 %v876
      %v988 = vpop.f32.mrf.mxu0
      %v989 = vadd.f32 %v819, %v988
      %990 = vmatmul.f32.gmra.mxu0 %v879
      %v991 = vpop.f32.mrf.mxu0
      %v992 = vadd.f32 %v819, %v991
      %993 = vmatmul.f32.gmra.mxu0 %v882
      %v994 = vpop.f32.mrf.mxu0
      %v995 = vadd.f32 %v819, %v994
      %996 = vmatmul.f32.gmra.mxu0 %v885
      %v997 = vpop.f32.mrf.mxu0
      %v998 = vadd.f32 %v819, %v997
      %999 = vmatmul.f32.gmra.mxu0 %v888
      %v1000 = vpop.f32.mrf.mxu0
      %v1001 = vadd.f32 %v819, %v1000
      %1002 = vmatmul.f32.gmra.mxu0 %v891
      %v1003 = vpop.f32.mrf.mxu0
      %v1004 = vadd.f32 %v819, %v1003
      %1005 = vmatmul.f32.gmra.mxu0 %v894
      %v1006 = vpop.f32.mrf.mxu0
      %v1007 = vadd.f32 %v819, %v1006
      %1008 = vmatmul.f32.gmra.mxu0 %v897
      %v1009 = vpop.f32.mrf.mxu0
      %v1010 = vadd.f32 %v819, %v1009
      %1011 = vmatmul.f32.gmra.mxu0 %v900
      %v1012 = vpop.f32.mrf.mxu0
      %v1013 = vadd.f32 %v819, %v1012
      %1014 = vmatmul.f32.gmra.mxu0 %v903
      %v1015 = vpop.f32.mrf.mxu0
      %v1016 = vadd.f32 %v819, %v1015
      %1017 = vmatmul.f32.gmra.mxu0 %v906
      %v1018 = vpop.f32.mrf.mxu0
      %v1019 = vadd.f32 %v819, %v1018
      %1020 = vmatmul.f32.gmra.mxu0 %v909
      %v1021 = vpop.f32.mrf.mxu0
      %v1022 = vadd.f32 %v819, %v1021
      %1023 = vmatmul.f32.gmra.mxu0 %v912
      %v1024 = vpop.f32.mrf.mxu0
      %v1025 = vadd.f32 %v819, %v1024
      %1026 = vmatmul.f32.gmra.mxu0 %v915
      %v1027 = vpop.f32.mrf.mxu0
      %v1028 = vadd.f32 %v819, %v1027
      %1029 = vdwg.mxu0
      %vm1030 = vcmask 64512
      %1031 = vst.msk [vmem:[%s280] sm:$0xff] %vm1030, %v935
      %1032 = vst.msk [vmem:[%s280 + $0x8] sm:$0xff] %vm1030, %v938
      %1033 = vst.msk [vmem:[%s280 + $0x10] sm:$0xff] %vm1030, %v941
      %1034 = vst.msk [vmem:[%s280 + $0x18] sm:$0xff] %vm1030, %v944
      %1035 = vst.msk [vmem:[%s280 + $0x20] sm:$0xff] %vm1030, %v947
      %1036 = vst.msk [vmem:[%s280 + $0x28] sm:$0xff] %vm1030, %v950
      %1037 = vst.msk [vmem:[%s280 + $0x30] sm:$0xff] %vm1030, %v953
      %1038 = vst.msk [vmem:[%s280 + $0x38] sm:$0xff] %vm1030, %v956
      %1039 = vst.msk [vmem:[%s280 + $0x40] sm:$0xff] %vm1030, %v959
      %1040 = vst.msk [vmem:[%s280 + $0x48] sm:$0xff] %vm1030, %v962
      %1041 = vst.msk [vmem:[%s280 + $0x50] sm:$0xff] %vm1030, %v965
      %1042 = vst.msk [vmem:[%s280 + $0x58] sm:$0xff] %vm1030, %v968
      %1043 = vst.msk [vmem:[%s280 + $0x60] sm:$0xff] %vm1030, %v971
      %1044 = vst.msk [vmem:[%s280 + $0x68] sm:$0xff] %vm1030, %v974
      %1045 = vst.msk [vmem:[%s280 + $0x70] sm:$0xff] %vm1030, %v977
      %1046 = vst.msk [vmem:[%s280 + $0x78] sm:$0xff] %vm1030, %v980
      %1047 = vst.msk [vmem:[%s280 + $0x80] sm:$0xff] %vm1030, %v983
      %1048 = vst.msk [vmem:[%s280 + $0x88] sm:$0xff] %vm1030, %v986
      %1049 = vst.msk [vmem:[%s280 + $0x90] sm:$0xff] %vm1030, %v989
      %1050 = vst.msk [vmem:[%s280 + $0x98] sm:$0xff] %vm1030, %v992
      %1051 = vst.msk [vmem:[%s280 + $0xa0] sm:$0xff] %vm1030, %v995
      %1052 = vst.msk [vmem:[%s280 + $0xa8] sm:$0xff] %vm1030, %v998
      %1053 = vst.msk [vmem:[%s280 + $0xb0] sm:$0xff] %vm1030, %v1001
      %1054 = vst.msk [vmem:[%s280 + $0xb8] sm:$0xff] %vm1030, %v1004
      %1055 = vst.msk [vmem:[%s280 + $0xc0] sm:$0xff] %vm1030, %v1007
      %1056 = vst.msk [vmem:[%s280 + $0xc8] sm:$0xff] %vm1030, %v1010
      %1057 = vst.msk [vmem:[%s280 + $0xd0] sm:$0xff] %vm1030, %v1013
      %1058 = vst.msk [vmem:[%s280 + $0xd8] sm:$0xff] %vm1030, %v1016
      %1059 = vst.msk [vmem:[%s280 + $0xe0] sm:$0xff] %vm1030, %v1019
      %1060 = vst.msk [vmem:[%s280 + $0xe8] sm:$0xff] %vm1030, %v1022
      %1061 = vst.msk [vmem:[%s280 + $0xf0] sm:$0xff] %vm1030, %v1025
      %1062 = vst.msk [vmem:[%s280 + $0xf8] sm:$0xff] %vm1030, %v1028
      %s1063 = smul.u32 32, %s18
      %p1064 = scmp.lt.s32.totalorder %s1063, 127
      %s1065 = scalar_select %p1064, %s1063, 127
      %s1066 = smul.addr %s1065, 8
      %s1067 = scalar_lea.vmem %s7, %s1066
      // Predicated region
      $region49: #{tpu_custom_call.1} parent=47 // pred_check
        %p1068 = pneg %p188
      $region50: #{tpu_custom_call.1} parent=47 // pred_check_branch
        %1070 = sbr.rel (%p1068) target = $region52
      $region51: #{tpu_custom_call.1} parent=47 // pred_region
        %s1071 = smul.u32 32, %s18
      $region52: #{tpu_custom_call.1} parent=47 // pred_fallthru
        _
    $region48: #{tpu_custom_call.1} parent=5 // pred_fallthru
      _
    %p1072 = scmp.le.s32.totalorder 2, %s13
    // Predicated region
    $region53: #{tpu_custom_call.1} parent=5 // pred_check
      %p1073 = pneg %p1072
    $region54: #{tpu_custom_call.1} parent=5 // pred_check_branch
      %1075 = sbr.rel (%p1073) target = $region56
    $region55: #{tpu_custom_call.1} parent=5 // pred_region
      %s1076 = ssub.s32 %s13, 2
      // Predicated region
      $region57: #{tpu_custom_call.1} parent=55 // pred_check
        %p1077 = pneg %p194
      $region58: #{tpu_custom_call.1} parent=55 // pred_check_branch
        %1079 = sbr.rel (%p1077) target = $region60
      $region59: #{tpu_custom_call.1} parent=55 // pred_region
        %s1080 = smul.u32 32, %s19
        %p1081 = scmp.lt.s32.totalorder %s1080, 127
        %s1082 = scalar_select %p1081, %s1080, 127
        %s1083 = smul.addr %s1082, 8
        %s1084 = scalar_lea.vmem %s7, %s1083
      $region60: #{tpu_custom_call.1} parent=55 // pred_fallthru
        _
    $region56: #{tpu_custom_call.1} parent=5 // pred_fallthru
      _
  $region6: #{tpu_custom_call.1} parent=0 // loop_footer
    %s17 = sadd.s32 1, %s13
  $region7: #{tpu_custom_call.1} parent=0 // loop_footer_branch
    %12 = sbr.rel target = $region3
  $region8: #{tpu_custom_call.1} parent=0 // loop_exit
    _

</llo_original>
